<compile_context>
chip_gen: v5e
topology: v5e:2x2
jax: 0.10.0
libtpu: 0.0.40
codegen_flags: <defaults>
</compile_context>

<pallas_src>
import jax
import jax.numpy as jnp
from jax import lax
from jax.experimental import pallas as pl
from jax.experimental.pallas import tpu as pltpu


def mininet_kernel(patches_ref, wblk_ref, bc_ref, w1_ref, b1_ref,
                   w23_ref, b23_ref, out_ref):
    # conv1 (as block-diagonal matmul) + bias + relu
    conv = jnp.dot(patches_ref[...], wblk_ref[...],
                   preferred_element_type=jnp.float32)
    conv = jnp.maximum(conv + bc_ref[...], 0.0)                # relu(conv1)
    # fc1 + bias + relu (bias added once, after the matmul)
    h1 = jnp.dot(conv, w1_ref[...],
                 preferred_element_type=jnp.float32) + b1_ref[...]
    h1 = jnp.maximum(h1, 0.0)                                  # relu(fc1)
    # fused fc2∘fc3 + bias, then tanh
    h3 = jnp.dot(h1, w23_ref[...],
                 preferred_element_type=jnp.float32) + b23_ref[...]
    out_ref[...] = jnp.tanh(h3)


def mininet_forward(x, params, tile_b=None):
    """x: (B, 2, 3, 3) NCHW float32. Returns (B, 1) float32."""
    wc, bc, w1, b1, w2, b2, w3, b3 = params  # PyTorch-convention shapes
    B = x.shape[0]

    # --- host-side glue (pure layout / algebraic folding, no heavy compute) ---
    # im2col in lane-dense (B, 32) layout: columns = [p0 | p1 | p2 | p3],
    # each 8-wide patch block ordered ic*4 + kh*2 + kw (matches wc.reshape(16,8)).
    patches = jnp.concatenate(
        [x[:, :, oh:oh + 2, ow:ow + 2].reshape(B, 8)
         for oh in range(2) for ow in range(2)], axis=1)            # (B, 32)

    wc_mat = wc.reshape(16, 8).T                                    # (8, 16)
    wblk = jnp.kron(jnp.eye(4, dtype=wc_mat.dtype), wc_mat)         # (32, 64) block-diag
    bc_tiled = jnp.tile(bc, 4).reshape(1, 64)                       # col p*16+c -> bc[c]

    # fc1 in x@M form with rows permuted so row p*16+c == (w1.T)[c*4+p, :]
    w1perm = w1.T.reshape(16, 4, 120).transpose(1, 0, 2).reshape(64, 120)

    # fuse fc2 and fc3 (no nonlinearity in between); high precision so the
    # folded weights are bit-accurate enough vs. the unfused reference.
    w23 = jnp.dot(w2.T, w3.T, precision=lax.Precision.HIGHEST)      # (120, 1)
    b23 = (jnp.dot(b2, w3.T, precision=lax.Precision.HIGHEST)
           + b3).reshape(1, 1)                                      # (1, 1)

    # --- batch tiling ---
    if tile_b is None:
        # sized for v7x's smaller VMEM (64 MiB); also fine on v5e/v6e.
        tile_b = min(2048, pl.cdiv(B, 8) * 8)
    tile_b = max(8, (tile_b // 8) * 8)          # multiple of 8 (sublane tiling)
    b_pad = pl.cdiv(B, tile_b) * tile_b
    if b_pad != B:
        patches = jnp.pad(patches, ((0, b_pad - B), (0, 0)))
    grid = (b_pad // tile_b,)

    in_specs = [
        pl.BlockSpec((tile_b, 32), lambda i: (i, 0)),   # patches: tiled over batch
        pl.BlockSpec((32, 64),  lambda i: (0, 0)),      # wblk    (resident)
        pl.BlockSpec((1, 64),   lambda i: (0, 0)),      # bc      (resident)
        pl.BlockSpec((64, 120), lambda i: (0, 0)),      # w1perm  (resident)
        pl.BlockSpec((1, 120),  lambda i: (0, 0)),      # b1      (resident)
        pl.BlockSpec((120, 1),  lambda i: (0, 0)),      # w23     (resident)
        pl.BlockSpec((1, 1),    lambda i: (0, 0)),      # b23     (resident)
    ]
    out_spec = pl.BlockSpec((tile_b, 1), lambda i: (i, 0))

    out = pl.pallas_call(
        mininet_kernel,
        out_shape=jax.ShapeDtypeStruct((b_pad, 1), jnp.float32),
        grid=grid,
        in_specs=in_specs,
        out_specs=out_spec,
        compiler_params=pltpu.CompilerParams(
            dimension_semantics=("parallel",)),   # shards batch across TCs on v7x
    )(patches, wblk, bc_tiled, w1perm, b1.reshape(1, 120), w23, b23)

    return out[:B]


def mininet_reference(x, params):
    """Pure-JAX reference matching the PyTorch forward exactly."""
    wc, bc, w1, b1, w2, b2, w3, b3 = params
    y = lax.conv_general_dilated(
        x, wc, window_strides=(1, 1), padding='VALID',
        dimension_numbers=('NCHW', 'OIHW', 'NCHW'))
    y = jax.nn.relu(y + bc.reshape(1, 16, 1, 1))
    y = y.reshape(x.shape[0], -1)          # torch.flatten(x, 1): (B, 64)
    y = jax.nn.relu(y @ w1.T + b1)
    y = y @ w2.T + b2
    y = y @ w3.T + b3
    return jnp.tanh(y)


def init_params(key):
    ks = jax.random.split(key, 8)
    wc = jax.random.normal(ks[0], (16, 2, 2, 2), jnp.float32) * 0.2   # Conv2d(2,16,2)
    bc = jax.random.normal(ks[1], (16,), jnp.float32) * 0.1
    w1 = jax.random.normal(ks[2], (120, 64), jnp.float32) * 0.1       # Linear(64,120)
    b1 = jax.random.normal(ks[3], (120,), jnp.float32) * 0.1
    w2 = jax.random.normal(ks[4], (84, 120), jnp.float32) * 0.1       # Linear(120,84)
    b2 = jax.random.normal(ks[5], (84,), jnp.float32) * 0.1
    w3 = jax.random.normal(ks[6], (1, 84), jnp.float32) * 0.1         # Linear(84,1)
    b3 = jax.random.normal(ks[7], (1,), jnp.float32) * 0.1
    return (wc, bc, w1, b1, w2, b2, w3, b3)


if __name__ == "__main__":
    key = jax.random.PRNGKey(0)
    pkey, xkey = jax.random.split(key)
    params = init_params(pkey)

    # fc1 expects 64 = 16*2*2 features -> conv output 2x2 -> input spatial 3x3
    B = 2
    x = jax.random.normal(xkey, (B, 2, 3, 3), jnp.float32)

    out = mininet_forward(x, params)
    out = jax.block_until_ready(out)

    ref = mininet_reference(x, params)
    assert out.shape == (B, 1), out.shape
    assert jnp.allclose(out, ref, atol=1e-5, rtol=1e-5), (out, ref)

    print("KERNEL_OK")
</pallas_src>

<mosaic_0001>
module attributes {stable_mosaic.version = 11 : i64} {
  func.func @mininet_kernel(%arg0: i32, %arg1: memref<8x32xf32, #tpu.memory_space<vmem>>, %arg2: memref<32x64xf32, #tpu.memory_space<vmem>>, %arg3: memref<1x64xf32, #tpu.memory_space<vmem>>, %arg4: memref<64x120xf32, #tpu.memory_space<vmem>>, %arg5: memref<1x120xf32, #tpu.memory_space<vmem>>, %arg6: memref<120x1xf32, #tpu.memory_space<vmem>>, %arg7: memref<1x1xf32, #tpu.memory_space<vmem>>, %arg8: memref<8x1xf32, #tpu.memory_space<vmem>>) attributes {dimension_semantics = [#tpu.dimension_semantics<parallel>], iteration_bounds = array<i64: 1>, scalar_prefetch = 0 : i64, scratch_operands = 0 : i64, tpu.core_type = #tpu.core_type<tc>, window_params = [{transform_indices = @transform_0, window_bounds = array<i64: 8, 32>}, {pipeline_mode = #tpu.pipeline_mode<synchronous>, transform_indices = @transform_1, window_bounds = array<i64: 32, 64>}, {pipeline_mode = #tpu.pipeline_mode<synchronous>, transform_indices = @transform_2, window_bounds = array<i64: 1, 64>}, {pipeline_mode = #tpu.pipeline_mode<synchronous>, transform_indices = @transform_3, window_bounds = array<i64: 64, 120>}, {pipeline_mode = #tpu.pipeline_mode<synchronous>, transform_indices = @transform_4, window_bounds = array<i64: 1, 120>}, {pipeline_mode = #tpu.pipeline_mode<synchronous>, transform_indices = @transform_5, window_bounds = array<i64: 120, 1>}, {pipeline_mode = #tpu.pipeline_mode<synchronous>, transform_indices = @transform_6, window_bounds = array<i64: 1, 1>}, {transform_indices = @transform_7, window_bounds = array<i64: 8, 1>}]} {
    %c0 = arith.constant 0 : index
    %c0_0 = arith.constant 0 : index
    %0 = vector.load %arg1[%c0, %c0_0] : memref<8x32xf32, #tpu.memory_space<vmem>>, vector<8x32xf32>
    %c0_1 = arith.constant 0 : index
    %c0_2 = arith.constant 0 : index
    %1 = vector.load %arg2[%c0_1, %c0_2] : memref<32x64xf32, #tpu.memory_space<vmem>>, vector<32x64xf32>
    %cst = arith.constant dense<0.000000e+00> : vector<8x64xf32>
    %2 = tpu.matmul %0, %1, %cst {dimension_numbers = #tpu.dot_dimension_numbers<[1], [0], [0], [1], [0, 0, 1, 1], [], []>} : vector<8x32xf32>, vector<32x64xf32>, vector<8x64xf32> -> vector<8x64xf32>
    %c0_3 = arith.constant 0 : index
    %c0_4 = arith.constant 0 : index
    %3 = vector.load %arg3[%c0_3, %c0_4] : memref<1x64xf32, #tpu.memory_space<vmem>>, vector<1x64xf32>
    %4 = vector.broadcast %3 : vector<1x64xf32> to vector<8x64xf32>
    %5 = arith.addf %2, %4 : vector<8x64xf32>
    %cst_5 = arith.constant 0.000000e+00 : f32
    %6 = vector.broadcast %cst_5 : f32 to vector<8x64xf32>
    %7 = arith.maximumf %5, %6 : vector<8x64xf32>
    %c0_6 = arith.constant 0 : index
    %c0_7 = arith.constant 0 : index
    %8 = vector.load %arg4[%c0_6, %c0_7] : memref<64x120xf32, #tpu.memory_space<vmem>>, vector<64x120xf32>
    %cst_8 = arith.constant dense<0.000000e+00> : vector<8x120xf32>
    %9 = tpu.matmul %7, %8, %cst_8 {dimension_numbers = #tpu.dot_dimension_numbers<[1], [0], [0], [1], [0, 0, 1, 1], [], []>} : vector<8x64xf32>, vector<64x120xf32>, vector<8x120xf32> -> vector<8x120xf32>
    %c0_9 = arith.constant 0 : index
    %c0_10 = arith.constant 0 : index
    %10 = vector.load %arg5[%c0_9, %c0_10] : memref<1x120xf32, #tpu.memory_space<vmem>>, vector<1x120xf32>
    %11 = vector.broadcast %10 : vector<1x120xf32> to vector<8x120xf32>
    %12 = arith.addf %9, %11 : vector<8x120xf32>
    %cst_11 = arith.constant 0.000000e+00 : f32
    %13 = vector.broadcast %cst_11 : f32 to vector<8x120xf32>
    %14 = arith.maximumf %12, %13 : vector<8x120xf32>
    %c0_12 = arith.constant 0 : index
    %c0_13 = arith.constant 0 : index
    %15 = vector.load %arg6[%c0_12, %c0_13] : memref<120x1xf32, #tpu.memory_space<vmem>>, vector<120x1xf32>
    %cst_14 = arith.constant dense<0.000000e+00> : vector<8x1xf32>
    %16 = tpu.matmul %14, %15, %cst_14 {dimension_numbers = #tpu.dot_dimension_numbers<[1], [0], [0], [1], [0, 0, 1, 1], [], []>} : vector<8x120xf32>, vector<120x1xf32>, vector<8x1xf32> -> vector<8x1xf32>
    %c0_15 = arith.constant 0 : index
    %c0_16 = arith.constant 0 : index
    %17 = vector.load %arg7[%c0_15, %c0_16] : memref<1x1xf32, #tpu.memory_space<vmem>>, vector<1x1xf32>
    %18 = vector.broadcast %17 : vector<1x1xf32> to vector<8x1xf32>
    %19 = arith.addf %16, %18 : vector<8x1xf32>
    %20 = math.tanh %19 : vector<8x1xf32>
    %c0_17 = arith.constant 0 : index
    %c0_18 = arith.constant 0 : index
    %21 = vector.load %arg8[%c0_17, %c0_18] : memref<8x1xf32, #tpu.memory_space<vmem>>, vector<8x1xf32>
    tpu.vector_store %arg8[%c0_17, %c0_18], %20 {strides = array<i32>} : memref<8x1xf32, #tpu.memory_space<vmem>>, vector<8x1xf32>,
    return
  }
  func.func @transform_0(%arg0: i32) -> (i32, i32) {
    %c0_i32 = arith.constant 0 : i32
    %c0_i32_0 = arith.constant 0 : i32
    return %arg0, %c0_i32 : i32, i32
  }
  func.func @transform_1(%arg0: i32) -> (i32, i32) {
    %c0_i32 = arith.constant 0 : i32
    %c0_i32_0 = arith.constant 0 : i32
    %c0_i32_1 = arith.constant 0 : i32
    return %c0_i32, %c0_i32_0 : i32, i32
  }
  func.func @transform_2(%arg0: i32) -> (i32, i32) {
    %c0_i32 = arith.constant 0 : i32
    %c0_i32_0 = arith.constant 0 : i32
    %c0_i32_1 = arith.constant 0 : i32
    return %c0_i32, %c0_i32_0 : i32, i32
  }
  func.func @transform_3(%arg0: i32) -> (i32, i32) {
    %c0_i32 = arith.constant 0 : i32
    %c0_i32_0 = arith.constant 0 : i32
    %c0_i32_1 = arith.constant 0 : i32
    return %c0_i32, %c0_i32_0 : i32, i32
  }
  func.func @transform_4(%arg0: i32) -> (i32, i32) {
    %c0_i32 = arith.constant 0 : i32
    %c0_i32_0 = arith.constant 0 : i32
    %c0_i32_1 = arith.constant 0 : i32
    return %c0_i32, %c0_i32_0 : i32, i32
  }
  func.func @transform_5(%arg0: i32) -> (i32, i32) {
    %c0_i32 = arith.constant 0 : i32
    %c0_i32_0 = arith.constant 0 : i32
    %c0_i32_1 = arith.constant 0 : i32
    return %c0_i32, %c0_i32_0 : i32, i32
  }
  func.func @transform_6(%arg0: i32) -> (i32, i32) {
    %c0_i32 = arith.constant 0 : i32
    %c0_i32_0 = arith.constant 0 : i32
    %c0_i32_1 = arith.constant 0 : i32
    return %c0_i32, %c0_i32_0 : i32, i32
  }
  func.func @transform_7(%arg0: i32) -> (i32, i32) {
    %c0_i32 = arith.constant 0 : i32
    %c0_i32_0 = arith.constant 0 : i32
    return %arg0, %c0_i32 : i32, i32
  }
}

</mosaic_0001>

<llo_original>
// kernel: tpu_custom_call.1
$region0: #{tpu_custom_call.1}
  #allocation0 [shape = 'u32[]', space=smem, size = 0x4, offset = 0x4, fixed_abs, tag = 'smem constant byte address 0x4 - core index']
  #allocation1 [shape = 'u32[72,128]{1,0:T(1,128)}', space=vmem, size = 0x9000, scoped, tag = 'internal scratch']
  #allocation2 [shape = 'f32[1,1]{1,0:T(1,128)S(1)}', space=vmem, size = 0x200, scoped, tag = 'scoped memory for tpu_custom_call.1']
  %s0 = inlined_call_operand.vmem [shape: f32[8,32], index: 0, kind: input, shape index: {}]
  %s1 = inlined_call_operand.vmem [shape: f32[32,64], index: 1, kind: input, shape index: {}]
  %s2 = inlined_call_operand.vmem [shape: f32[1,64], index: 2, kind: input, shape index: {}]
  %s3 = inlined_call_operand.vmem [shape: f32[64,120], index: 3, kind: input, shape index: {}]
  %s4 = inlined_call_operand.vmem [shape: f32[1,120], index: 4, kind: input, shape index: {}]
  %s5 = inlined_call_operand.vmem [shape: f32[120,1], index: 5, kind: input, shape index: {}]
  %s6 = inlined_call_operand.<no memory space> [shape: f32[1,1], index: 6, kind: input, shape index: {}]
  %s7 = inlined_call_operand.vmem [shape: f32[8,1], index: 7, kind: output, shape index: {}]
  %s8 = sld [smem:[#allocation0]]
  $region38: #{tpu_custom_call.1} parent=0
    _
  %s10 = ssub.s32 1, %s8
  %s11 = scalar_select 0, %s10, %s8
  %v12 = vstv %s6
  %13 = vst [vmem:[#allocation2] sm:$0x1] %v12
  // Predicated region
  $region2: #{tpu_custom_call.1} parent=0 // pred_check
    _
  $region3: #{tpu_custom_call.1} parent=0 // pred_check_branch
    %15 = sbr.rel (0) target = $region5
  $region4: #{tpu_custom_call.1} parent=0 // pred_region
    _
  $region5: #{tpu_custom_call.1} parent=0 // pred_fallthru
    _
  // Predicated region
  $region6: #{tpu_custom_call.1} parent=0 // pred_check
    _
  $region7: #{tpu_custom_call.1} parent=0 // pred_check_branch
    %17 = sbr.rel (0) target = $region9
  $region8: #{tpu_custom_call.1} parent=0 // pred_region
    _
  $region9: #{tpu_custom_call.1} parent=0 // pred_fallthru
    _
  // Predicated region
  $region10: #{tpu_custom_call.1} parent=0 // pred_check
    _
  $region11: #{tpu_custom_call.1} parent=0 // pred_check_branch
    %19 = sbr.rel (0) target = $region13
  $region12: #{tpu_custom_call.1} parent=0 // pred_region
    _
  $region13: #{tpu_custom_call.1} parent=0 // pred_fallthru
    _
  // Predicated region
  $region14: #{tpu_custom_call.1} parent=0 // pred_check
    _
  $region15: #{tpu_custom_call.1} parent=0 // pred_check_branch
    %21 = sbr.rel (0) target = $region17
  $region16: #{tpu_custom_call.1} parent=0 // pred_region
    _
  $region17: #{tpu_custom_call.1} parent=0 // pred_fallthru
    _
  // Predicated region
  $region18: #{tpu_custom_call.1} parent=0 // pred_check
    _
  $region19: #{tpu_custom_call.1} parent=0 // pred_check_branch
    %23 = sbr.rel (0) target = $region21
  $region20: #{tpu_custom_call.1} parent=0 // pred_region
    _
  $region21: #{tpu_custom_call.1} parent=0 // pred_fallthru
    _
  // Predicated region
  $region22: #{tpu_custom_call.1} parent=0 // pred_check
    _
  $region23: #{tpu_custom_call.1} parent=0 // pred_check_branch
    %25 = sbr.rel (0) target = $region25
  $region24: #{tpu_custom_call.1} parent=0 // pred_region
    _
  $region25: #{tpu_custom_call.1} parent=0 // pred_fallthru
    _
  // Predicated region
  $region26: #{tpu_custom_call.1} parent=0 // pred_check
    _
  $region27: #{tpu_custom_call.1} parent=0 // pred_check_branch
    %27 = sbr.rel (0) target = $region29
  $region28: #{tpu_custom_call.1} parent=0 // pred_region
    _
  $region29: #{tpu_custom_call.1} parent=0 // pred_fallthru
    _
  %v28 = vld [vmem:[%s0] sm:$0xff]
  %v29 = vld [vmem:[%s1] sm:$0xff]
  %v30 = vld [vmem:[%s1 + $0x8] sm:$0xff]
  %v31 = vld [vmem:[%s1 + $0x10] sm:$0xff]
  %v32 = vld [vmem:[%s1 + $0x18] sm:$0xff]
  %v33 = vld [vmem:[%s2] sm:$0x1]
  %v35 = vperm.slane %v33, 0
  %vm37 = vcmask 261120
  %v39 = vsel %vm37, %v28, 0
  %41 = vmatpush.msra.mxu0 0.0
  %42 = vmatpush.msra.mxu0 0.0
  %43 = vmatpush.msra.mxu0 0.0
  %44 = vmatpush.msra.mxu0 0.0
  %45 = vmatpush.msra.mxu0 0.0
  %46 = vmatpush.msra.mxu0 0.0
  %47 = vmatpush.msra.mxu0 0.0
  %48 = vmatpush.msra.mxu0 0.0
  %49 = vmatpush.msra.mxu0 0.0
  %50 = vmatpush.msra.mxu0 0.0
  %51 = vmatpush.msra.mxu0 0.0
  %52 = vmatpush.msra.mxu0 0.0
  %53 = vmatpush.msra.mxu0 %v32
  %54 = vmatpush.msra.mxu0 %v31
  %55 = vmatpush.msra.mxu0 %v30
  %56 = vmatpush.msra.mxu0 %v29
  %57 = vmatmul.f32.gmra.mxu0 %v39
  %v58 = vpop.f32.mrf.mxu0
  %v59 = vadd.f32 %v35, %v58
  %60 = vdwg.mxu0
  %v61 = vmax.f32 %v59, 0.0
  %v62 = vld [vmem:[%s3] sm:$0xff]
  %v63 = vld [vmem:[%s3 + $0x8] sm:$0xff]
  %v64 = vld [vmem:[%s3 + $0x10] sm:$0xff]
  %v65 = vld [vmem:[%s3 + $0x18] sm:$0xff]
  %v66 = vld [vmem:[%s3 + $0x20] sm:$0xff]
  %v67 = vld [vmem:[%s3 + $0x28] sm:$0xff]
  %v68 = vld [vmem:[%s3 + $0x30] sm:$0xff]
  %v69 = vld [vmem:[%s3 + $0x38] sm:$0xff]
  %v70 = vld [vmem:[%s4] sm:$0x1]
  %v72 = vperm.slane %v70, 0
  %vm74 = vcmask 523264
  %v76 = vsel %vm74, %v61, 0
  %78 = vmatpush.msra.mxu0 0.0
  %79 = vmatpush.msra.mxu0 0.0
  %80 = vmatpush.msra.mxu0 0.0
  %81 = vmatpush.msra.mxu0 0.0
  %82 = vmatpush.msra.mxu0 0.0
  %83 = vmatpush.msra.mxu0 0.0
  %84 = vmatpush.msra.mxu0 0.0
  %85 = vmatpush.msra.mxu0 0.0
  %86 = vmatpush.msra.mxu0 %v69
  %87 = vmatpush.msra.mxu0 %v68
  %88 = vmatpush.msra.mxu0 %v67
  %89 = vmatpush.msra.mxu0 %v66
  %90 = vmatpush.msra.mxu0 %v65
  %91 = vmatpush.msra.mxu0 %v64
  %92 = vmatpush.msra.mxu0 %v63
  %93 = vmatpush.msra.mxu0 %v62
  %94 = vmatmul.f32.gmra.mxu0 %v76
  %v95 = vpop.f32.mrf.mxu0
  %v96 = vadd.f32 %v72, %v95
  %97 = vdwg.mxu0
  %v98 = vmax.f32 %v96, 0.0
  %v99 = vld [vmem:[%s5] sm:$0xff]
  %v100 = vld [vmem:[%s5 + $0x8] sm:$0xff]
  %v101 = vld [vmem:[%s5 + $0x10] sm:$0xff]
  %v102 = vld [vmem:[%s5 + $0x18] sm:$0xff]
  %v103 = vld [vmem:[%s5 + $0x20] sm:$0xff]
  %v104 = vld [vmem:[%s5 + $0x28] sm:$0xff]
  %v105 = vld [vmem:[%s5 + $0x30] sm:$0xff]
  %v106 = vld [vmem:[%s5 + $0x38] sm:$0xff]
  %v107 = vld [vmem:[%s5 + $0x40] sm:$0xff]
  %v108 = vld [vmem:[%s5 + $0x48] sm:$0xff]
  %v109 = vld [vmem:[%s5 + $0x50] sm:$0xff]
  %v110 = vld [vmem:[%s5 + $0x58] sm:$0xff]
  %v111 = vld [vmem:[%s5 + $0x60] sm:$0xff]
  %v112 = vld [vmem:[%s5 + $0x68] sm:$0xff]
  %v113 = vld [vmem:[%s5 + $0x70] sm:$0xff]
  %v114 = vld [vmem:[#allocation2] sm:$0x1]
  %v116 = vperm.slane %v114, 0
  %vm118 = vcmask 982016
  %v120 = vsel %vm118, %v98, 0
  %122 = vmatpush.msra.mxu0 0.0
  %123 = vmatpush.msra.mxu0 %v113
  %124 = vmatpush.msra.mxu0 %v112
  %125 = vmatpush.msra.mxu0 %v111
  %126 = vmatpush.msra.mxu0 %v110
  %127 = vmatpush.msra.mxu0 %v109
  %128 = vmatpush.msra.mxu0 %v108
  %129 = vmatpush.msra.mxu0 %v107
  %130 = vmatpush.msra.mxu0 %v106
  %131 = vmatpush.msra.mxu0 %v105
  %132 = vmatpush.msra.mxu0 %v104
  %133 = vmatpush.msra.mxu0 %v103
  %134 = vmatpush.msra.mxu0 %v102
  %135 = vmatpush.msra.mxu0 %v101
  %136 = vmatpush.msra.mxu0 %v100
  %137 = vmatpush.msra.mxu0 %v99
  %138 = vmatmul.f32.gmra.mxu0 %v120
  %v139 = vpop.f32.mrf.mxu0
  %v140 = vadd.f32 %v116, %v139
  %141 = vdwg.mxu0
  %v142 = vtanh.pop %v140
  %vm143 = vcmask 7168
  %144 = vst.msk [vmem:[%s7] sm:$0xff] %vm143, %v142
  // Predicated region
  $region30: #{tpu_custom_call.1} parent=0 // pred_check
    _
  $region31: #{tpu_custom_call.1} parent=0 // pred_check_branch
    %146 = sbr.rel (0) target = $region33
  $region32: #{tpu_custom_call.1} parent=0 // pred_region
    _
  $region33: #{tpu_custom_call.1} parent=0 // pred_fallthru
    _
  // Predicated region
  $region34: #{tpu_custom_call.1} parent=0 // pred_check
    _
  $region35: #{tpu_custom_call.1} parent=0 // pred_check_branch
    %148 = sbr.rel (0) target = $region37
  $region36: #{tpu_custom_call.1} parent=0 // pred_region
    _
  $region37: #{tpu_custom_call.1} parent=0 // pred_fallthru
    _

</llo_original>
